<compile_context>
chip_gen: v6e
topology: v6e:2x2x1
jax: 0.10.0
libtpu: 0.0.40
codegen_flags: <defaults>
</compile_context>

<pallas_src>
import functools

import jax
import jax.numpy as jnp
from jax import lax
from jax.experimental import pallas as pl
from jax.experimental.pallas import tpu as pltpu


def _round_up(x, m):
    return (x + m - 1) // m * m


def _vmem_capacity_bytes():
    """Physical VMEM of one TensorCore; conservative fallback if unknown."""
    try:
        info = pltpu.get_tpu_info()
        for attr in ("vmem_capacity_bytes", "vmem_size_bytes", "vmem_bytes"):
            cap = getattr(info, attr, None)
            if cap:
                return int(cap)
    except Exception:
        pass
    return 64 * 1024 * 1024  # v7x per-TC VMEM (smallest generation); v5e/v6e have 128 MiB


def _onehot_gather_class_limit():
    """Largest cls_num for which the in-kernel one-hot MXU gather stays hidden
    under the x HBM stream (much lower on v5e: ~4.5x less MXU throughput)."""
    try:
        kind = jax.devices()[0].device_kind.lower()
    except Exception:
        kind = ""
    if "v5" in kind:
        return 256
    return 1024


def _make_onehot_kernel(n_rows, mask_tail):
    """Small-cls_num path: gather center[labels] via one_hot @ center on the MXU."""

    def kernel(x_ref, labels_ref, w_ref, c_ref, out_ref):
        # x_ref:      (TILE_N, F)    sample features
        # labels_ref: (TILE_N, 1)    int32 class ids
        # w_ref:      (TILE_N, 1)    f32 1/count per row
        # c_ref:      (cls_num, F)   full center table, resident in VMEM
        # out_ref:    (1, 1, 128)    lane-dense per-tile partial sum
        tile_n = labels_ref.shape[0]
        cls_num = c_ref.shape[0]

        x = x_ref[...].astype(jnp.float32)                                  # (T, F)
        labels = labels_ref[...]                                            # (T, 1)
        class_ids = lax.broadcasted_iota(jnp.int32, (tile_n, cls_num), 1)   # (T, C)
        # One-hot directly in the center's dtype: selection is exact, and for
        # bf16 tables this uses the native bf16 MXU path; accumulation is f32.
        onehot = (labels == class_ids).astype(c_ref.dtype)                  # (T, C)
        centers = jnp.dot(onehot, c_ref[...],
                          preferred_element_type=jnp.float32)               # (T, F)

        diff = x - centers
        w = w_ref[...]
        if mask_tail:
            # Last tile may read past the end of x/labels/w (x is NOT padded
            # in HBM); zero those rows before squaring so garbage never
            # reaches the sum (weight=0 alone could still give 0*NaN).
            row = pl.program_id(0) * tile_n + lax.broadcasted_iota(
                jnp.int32, (tile_n, 1), 0)
            valid = row < n_rows
            diff = jnp.where(valid, diff, 0.0)
            w = jnp.where(valid, w, 0.0)

        per_row = jnp.sum(diff * diff, axis=-1, keepdims=True)              # (T, 1)
        partial = jnp.sum(per_row * w)
        out_ref[...] = jnp.full(out_ref.shape, partial, dtype=jnp.float32)

    return kernel


def _make_stream_kernel(n_rows, mask_tail):
    """Large-cls_num path: centers pre-gathered in HBM by the wrapper and
    streamed next to x; kernel is purely elementwise + reduce (memory-bound)."""

    def kernel(x_ref, c_ref, w_ref, out_ref):
        tile_n = w_ref.shape[0]
        diff = x_ref[...].astype(jnp.float32) - c_ref[...].astype(jnp.float32)
        w = w_ref[...]
        if mask_tail:
            row = pl.program_id(0) * tile_n + lax.broadcasted_iota(
                jnp.int32, (tile_n, 1), 0)
            valid = row < n_rows
            diff = jnp.where(valid, diff, 0.0)
            w = jnp.where(valid, w, 0.0)
        per_row = jnp.sum(diff * diff, axis=-1, keepdims=True)
        out_ref[...] = jnp.full(out_ref.shape, jnp.sum(per_row * w),
                                dtype=jnp.float32)

    return kernel


@functools.partial(
    jax.jit, static_argnames=("tile_n", "gather_mode", "single_buffer_center"))
def center_loss(x, labels, center, tile_n=1024, gather_mode="auto",
                single_buffer_center=True):
    n, f = x.shape
    cls_num, f2 = center.shape
    assert f == f2
    labels = labels.astype(jnp.int32)

    # O(N) histogram -> per-sample 1/count (== torch.histc(...)[labels] for
    # integer labels; every gathered count is >= 1 so the guard is inert).
    counts = jnp.bincount(labels, length=cls_num)
    inv_counts = 1.0 / jnp.where(counts > 0, counts, 1).astype(jnp.float32)
    w = inv_counts[labels].reshape(n, 1)
    labels2 = labels.reshape(n, 1)

    if gather_mode == "auto":
        gather_mode = "onehot" if cls_num <= _onehot_gather_class_limit() else "stream"
    center_bufs = 1 if single_buffer_center else 2

    # ---- generation-aware VMEM budgeting (include in-kernel temporaries) ----
    cap = _vmem_capacity_bytes()
    usable = int(0.75 * cap)
    out_fixed = 2 * 128 * 4
    if gather_mode == "onehot":
        per_row = (2 * f * x.dtype.itemsize            # x stream (double-buffered)
                   + 2 * (4 + 4)                       # labels + weight streams
                   + cls_num * center.dtype.itemsize   # one-hot temp
                   + 3 * f * 4)                        # f32 x cast, centers, diff
        fixed = center_bufs * cls_num * f * center.dtype.itemsize + out_fixed
    else:
        per_row = (2 * f * (x.dtype.itemsize + center.dtype.itemsize)  # x + centers
                   + 2 * 4                             # weight stream
                   + 3 * f * 4)                        # f32 temps
        fixed = out_fixed

    slack = 4 * 1024 * 1024                            # Mosaic internal scratch etc.
    tn_cap = max(8, (usable - fixed - slack) // per_row // 8 * 8)
    tn = max(8, min(_round_up(tile_n, 8), tn_cap, _round_up(n, 8)))
    # >= 2 tiles for larger batches so the "parallel" axis can feed both v7x
    # TensorCores (one extra ~0.35us step elsewhere, negligible).
    if n >= 64 and -(-n // tn) < 2:
        tn = max(8, _round_up(-(-n // 2), 8))
    num_tiles = -(-n // tn)                            # last tile may be partial
    mask_tail = (num_tiles * tn != n)

    vmem_need = fixed + tn * per_row + slack
    vmem_limit = int(min(usable, max(32 * 1024 * 1024, vmem_need)))

    if gather_mode == "onehot":
        kernel = _make_onehot_kernel(n, mask_tail)
        if single_buffer_center:
            center_spec = pl.BlockSpec((cls_num, f), lambda i: (0, 0),
                                       pipeline_mode=pl.Buffered(1))
        else:
            center_spec = pl.BlockSpec((cls_num, f), lambda i: (0, 0))
        in_specs = [
            pl.BlockSpec((tn, f), lambda i: (i, 0)),   # x tile
            pl.BlockSpec((tn, 1), lambda i: (i, 0)),   # labels tile
            pl.BlockSpec((tn, 1), lambda i: (i, 0)),   # 1/count tile
            center_spec,                               # resident center table
        ]
        operands = (x, labels2, w, center)
    else:
        # Label-indexed gather done once in HBM by XLA (memory-bound), then the
        # kernel only streams x / gathered-centers / weights.
        gathered = jnp.take(center, labels, axis=0)
        kernel = _make_stream_kernel(n, mask_tail)
        in_specs = [
            pl.BlockSpec((tn, f), lambda i: (i, 0)),   # x tile
            pl.BlockSpec((tn, f), lambda i: (i, 0)),   # gathered center tile
            pl.BlockSpec((tn, 1), lambda i: (i, 0)),   # 1/count tile
        ]
        operands = (x, gathered, w)

    partials = pl.pallas_call(
        kernel,
        out_shape=jax.ShapeDtypeStruct((num_tiles, 1, 128), jnp.float32),
        grid_spec=pltpu.PrefetchScalarGridSpec(
            num_scalar_prefetch=0,
            grid=(num_tiles,),
            in_specs=in_specs,
            out_specs=pl.BlockSpec((1, 1, 128), lambda i: (i, 0, 0)),
        ),
        compiler_params=pltpu.CompilerParams(
            dimension_semantics=("parallel",),         # no loop-carried state
            vmem_limit_bytes=vmem_limit,
        ),
    )(*operands)

    return jnp.sum(partials[:, 0, 0])


if __name__ == "__main__":
    cls_num, features_num, batch = 10, 32, 8

    k0, k1, k2 = jax.random.split(jax.random.PRNGKey(0), 3)
    # Deterministic parameter init, mirrors nn.Parameter(torch.randn(cls_num, features_num)).
    center = jax.random.normal(k0, (cls_num, features_num), dtype=jnp.float32)
    x = jax.random.normal(k1, (batch, features_num), dtype=jnp.float32)
    labels = jax.random.randint(k2, (batch,), 0, cls_num, dtype=jnp.int32)

    # Pure-JAX reference of the PyTorch semantics.
    ref_counts = jnp.bincount(labels, length=cls_num).astype(jnp.float32)[labels]
    ref = jnp.sum(jnp.sum((x - center[labels]) ** 2, axis=-1) / ref_counts)

    # Default path: one-hot MXU gather with a single-buffered resident center.
    try:
        loss = jax.block_until_ready(center_loss(x, labels, center))
    except Exception:
        # Defensive fallback if this jax build rejects pipeline_mode=pl.Buffered(1)
        # on a pallas_call BlockSpec; identical semantics, double-buffered center.
        loss = jax.block_until_ready(
            center_loss(x, labels, center, single_buffer_center=False))
    assert jnp.allclose(loss, ref, rtol=1e-5, atol=1e-5), (loss, ref)

    # Large-class-count path (pre-gathered centers streamed next to x).
    loss_stream = jax.block_until_ready(
        center_loss(x, labels, center, gather_mode="stream"))
    assert jnp.allclose(loss_stream, ref, rtol=1e-5, atol=1e-5), (loss_stream, ref)

    print("KERNEL_OK")
</pallas_src>

<mosaic_0001>
module attributes {stable_mosaic.version = 11 : i64} {
  func.func private @main(%arg0: i32) attributes {dimension_semantics = [#tpu.dimension_semantics<core_parallel>], iteration_bounds = array<i64: 2>, tpu.core_type = #tpu.core_type<sc_scalar_subcore>, window_params = []} {
    return
  }
}

module attributes {stable_mosaic.version = 11 : i64} {
  func.func private @main(%arg0: i32) attributes {dimension_semantics = [#tpu.dimension_semantics<core_parallel>], iteration_bounds = array<i64: 2>, tpu.core_type = #tpu.core_type<sc_scalar_subcore>, window_params = []} {
    return
  }
}

module attributes {stable_mosaic.version = 11 : i64} {
  func.func @kernel(%arg0: i32, %arg1: memref<8x32xf32, #tpu.memory_space<vmem>>, %arg2: memref<8x1xi32, #tpu.memory_space<vmem>>, %arg3: memref<8x1xf32, #tpu.memory_space<vmem>>, %arg4: memref<10x32xf32, #tpu.memory_space<vmem>>, %arg5: memref<1x1x128xf32, #tpu.memory_space<vmem>>) attributes {dimension_semantics = [#tpu.dimension_semantics<parallel>], iteration_bounds = array<i64: 1>, scalar_prefetch = 0 : i64, scratch_operands = 0 : i64, tpu.core_type = #tpu.core_type<tc>, window_params = [{transform_indices = @transform_0, window_bounds = array<i64: 8, 32>}, {transform_indices = @transform_1, window_bounds = array<i64: 8, 1>}, {transform_indices = @transform_2, window_bounds = array<i64: 8, 1>}, {pipeline_mode = #tpu.pipeline_mode<synchronous>, transform_indices = @transform_3, window_bounds = array<i64: 10, 32>}, {transform_indices = @transform_4, window_bounds = array<i64: 1, 1, 128>}]} {
    %c0 = arith.constant 0 : index
    %c0_0 = arith.constant 0 : index
    %0 = vector.load %arg1[%c0, %c0_0] : memref<8x32xf32, #tpu.memory_space<vmem>>, vector<8x32xf32>
    %c0_1 = arith.constant 0 : index
    %c0_2 = arith.constant 0 : index
    %1 = vector.load %arg2[%c0_1, %c0_2] : memref<8x1xi32, #tpu.memory_space<vmem>>, vector<8x1xi32>
    %2 = tpu.iota {dimensions = array<i32: 1>} : vector<8x10xi32>
    %3 = vector.broadcast %1 : vector<8x1xi32> to vector<8x10xi32>
    %4 = arith.cmpi eq, %3, %2 : vector<8x10xi32>
    %5 = arith.extui %4 : vector<8x10xi1> to vector<8x10xi32>
    %6 = arith.sitofp %5 : vector<8x10xi32> to vector<8x10xf32>
    %c0_3 = arith.constant 0 : index
    %c0_4 = arith.constant 0 : index
    %7 = vector.load %arg4[%c0_3, %c0_4] : memref<10x32xf32, #tpu.memory_space<vmem>>, vector<10x32xf32>
    %cst = arith.constant dense<0.000000e+00> : vector<8x32xf32>
    %8 = tpu.matmul %6, %7, %cst {dimension_numbers = #tpu.dot_dimension_numbers<[1], [0], [0], [1], [0, 0, 1, 1], [], []>} : vector<8x10xf32>, vector<10x32xf32>, vector<8x32xf32> -> vector<8x32xf32>
    %9 = arith.subf %0, %8 : vector<8x32xf32>
    %c0_5 = arith.constant 0 : index
    %c0_6 = arith.constant 0 : index
    %10 = vector.load %arg3[%c0_5, %c0_6] : memref<8x1xf32, #tpu.memory_space<vmem>>, vector<8x1xf32>
    %11 = arith.mulf %9, %9 : vector<8x32xf32>
    %cst_7 = arith.constant dense<0.000000e+00> : vector<8xf32>
    %12 = vector.multi_reduction <add>, %11, %cst_7 [1] : vector<8x32xf32> to vector<8xf32>
    %13 = vector.shape_cast %12 : vector<8xf32> to vector<8x1xf32>
    %14 = arith.mulf %13, %10 : vector<8x1xf32>
    %15 = vector.shape_cast %14 : vector<8x1xf32> to vector<1x8x1xf32>
    %cst_8 = arith.constant dense<0.000000e+00> : vector<1xf32>
    %16 = vector.multi_reduction <add>, %15, %cst_8 [1, 2] : vector<1x8x1xf32> to vector<1xf32>
    %17 = vector.shape_cast %16 : vector<1xf32> to vector<1x1x1xf32>
    %18 = vector.extract %17[0, 0, 0] : f32 from vector<1x1x1xf32>
    %19 = vector.broadcast %18 : f32 to vector<1x1x128xf32>
    %c0_9 = arith.constant 0 : index
    %c0_10 = arith.constant 0 : index
    %c0_11 = arith.constant 0 : index
    %20 = vector.load %arg5[%c0_9, %c0_10, %c0_11] : memref<1x1x128xf32, #tpu.memory_space<vmem>>, vector<1x1x128xf32>
    tpu.vector_store %arg5[%c0_9, %c0_10, %c0_11], %19 {strides = array<i32>} : memref<1x1x128xf32, #tpu.memory_space<vmem>>, vector<1x1x128xf32>,
    return
  }
  func.func @transform_0(%arg0: i32) -> (i32, i32) {
    %c0_i32 = arith.constant 0 : i32
    %c0_i32_0 = arith.constant 0 : i32
    return %arg0, %c0_i32 : i32, i32
  }
  func.func @transform_1(%arg0: i32) -> (i32, i32) {
    %c0_i32 = arith.constant 0 : i32
    %c0_i32_0 = arith.constant 0 : i32
    return %arg0, %c0_i32 : i32, i32
  }
  func.func @transform_2(%arg0: i32) -> (i32, i32) {
    %c0_i32 = arith.constant 0 : i32
    %c0_i32_0 = arith.constant 0 : i32
    return %arg0, %c0_i32 : i32, i32
  }
  func.func @transform_3(%arg0: i32) -> (i32, i32) {
    %c0_i32 = arith.constant 0 : i32
    %c0_i32_0 = arith.constant 0 : i32
    %c0_i32_1 = arith.constant 0 : i32
    return %c0_i32, %c0_i32_0 : i32, i32
  }
  func.func @transform_4(%arg0: i32) -> (i32, i32, i32) {
    %c0_i32 = arith.constant 0 : i32
    %c0_i32_0 = arith.constant 0 : i32
    %c0_i32_1 = arith.constant 0 : i32
    return %arg0, %c0_i32, %c0_i32_0 : i32, i32, i32
  }
}

module attributes {stable_mosaic.version = 11 : i64} {
  func.func private @main(%arg0: i32) attributes {dimension_semantics = [#tpu.dimension_semantics<core_parallel>], iteration_bounds = array<i64: 2>, tpu.core_type = #tpu.core_type<sc_scalar_subcore>, window_params = []} {
    return
  }
}

module attributes {stable_mosaic.version = 11 : i64} {
  func.func private @main(%arg0: i32) attributes {dimension_semantics = [#tpu.dimension_semantics<core_parallel>], iteration_bounds = array<i64: 2>, tpu.core_type = #tpu.core_type<sc_scalar_subcore>, window_params = []} {
    return
  }
}

module attributes {stable_mosaic.version = 11 : i64} {
  func.func @kernel(%arg0: i32, %arg1: memref<8x32xf32, #tpu.memory_space<vmem>>, %arg2: memref<8x1xi32, #tpu.memory_space<vmem>>, %arg3: memref<8x1xf32, #tpu.memory_space<vmem>>, %arg4: memref<10x32xf32, #tpu.memory_space<vmem>>, %arg5: memref<1x1x128xf32, #tpu.memory_space<vmem>>) attributes {dimension_semantics = [#tpu.dimension_semantics<parallel>], iteration_bounds = array<i64: 1>, scalar_prefetch = 0 : i64, scratch_operands = 0 : i64, tpu.core_type = #tpu.core_type<tc>, window_params = [{transform_indices = @transform_0, window_bounds = array<i64: 8, 32>}, {transform_indices = @transform_1, window_bounds = array<i64: 8, 1>}, {transform_indices = @transform_2, window_bounds = array<i64: 8, 1>}, {pipeline_mode = #tpu.pipeline_mode<synchronous>, transform_indices = @transform_3, window_bounds = array<i64: 10, 32>}, {transform_indices = @transform_4, window_bounds = array<i64: 1, 1, 128>}]} {
    %c0 = arith.constant 0 : index
    %c0_0 = arith.constant 0 : index
    %0 = vector.load %arg1[%c0, %c0_0] : memref<8x32xf32, #tpu.memory_space<vmem>>, vector<8x32xf32>
    %c0_1 = arith.constant 0 : index
    %c0_2 = arith.constant 0 : index
    %1 = vector.load %arg2[%c0_1, %c0_2] : memref<8x1xi32, #tpu.memory_space<vmem>>, vector<8x1xi32>
    %2 = tpu.iota {dimensions = array<i32: 1>} : vector<8x10xi32>
    %3 = vector.broadcast %1 : vector<8x1xi32> to vector<8x10xi32>
    %4 = arith.cmpi eq, %3, %2 : vector<8x10xi32>
    %5 = arith.extui %4 : vector<8x10xi1> to vector<8x10xi32>
    %6 = arith.sitofp %5 : vector<8x10xi32> to vector<8x10xf32>
    %c0_3 = arith.constant 0 : index
    %c0_4 = arith.constant 0 : index
    %7 = vector.load %arg4[%c0_3, %c0_4] : memref<10x32xf32, #tpu.memory_space<vmem>>, vector<10x32xf32>
    %cst = arith.constant dense<0.000000e+00> : vector<8x32xf32>
    %8 = tpu.matmul %6, %7, %cst {dimension_numbers = #tpu.dot_dimension_numbers<[1], [0], [0], [1], [0, 0, 1, 1], [], []>} : vector<8x10xf32>, vector<10x32xf32>, vector<8x32xf32> -> vector<8x32xf32>
    %9 = arith.subf %0, %8 : vector<8x32xf32>
    %c0_5 = arith.constant 0 : index
    %c0_6 = arith.constant 0 : index
    %10 = vector.load %arg3[%c0_5, %c0_6] : memref<8x1xf32, #tpu.memory_space<vmem>>, vector<8x1xf32>
    %11 = arith.mulf %9, %9 : vector<8x32xf32>
    %cst_7 = arith.constant dense<0.000000e+00> : vector<8xf32>
    %12 = vector.multi_reduction <add>, %11, %cst_7 [1] : vector<8x32xf32> to vector<8xf32>
    %13 = vector.shape_cast %12 : vector<8xf32> to vector<8x1xf32>
    %14 = arith.mulf %13, %10 : vector<8x1xf32>
    %15 = vector.shape_cast %14 : vector<8x1xf32> to vector<1x8x1xf32>
    %cst_8 = arith.constant dense<0.000000e+00> : vector<1xf32>
    %16 = vector.multi_reduction <add>, %15, %cst_8 [1, 2] : vector<1x8x1xf32> to vector<1xf32>
    %17 = vector.shape_cast %16 : vector<1xf32> to vector<1x1x1xf32>
    %18 = vector.extract %17[0, 0, 0] : f32 from vector<1x1x1xf32>
    %19 = vector.broadcast %18 : f32 to vector<1x1x128xf32>
    %c0_9 = arith.constant 0 : index
    %c0_10 = arith.constant 0 : index
    %c0_11 = arith.constant 0 : index
    %20 = vector.load %arg5[%c0_9, %c0_10, %c0_11] : memref<1x1x128xf32, #tpu.memory_space<vmem>>, vector<1x1x128xf32>
    tpu.vector_store %arg5[%c0_9, %c0_10, %c0_11], %19 {strides = array<i32>} : memref<1x1x128xf32, #tpu.memory_space<vmem>>, vector<1x1x128xf32>,
    return
  }
  func.func @transform_0(%arg0: i32) -> (i32, i32) {
    %c0_i32 = arith.constant 0 : i32
    %c0_i32_0 = arith.constant 0 : i32
    return %arg0, %c0_i32 : i32, i32
  }
  func.func @transform_1(%arg0: i32) -> (i32, i32) {
    %c0_i32 = arith.constant 0 : i32
    %c0_i32_0 = arith.constant 0 : i32
    return %arg0, %c0_i32 : i32, i32
  }
  func.func @transform_2(%arg0: i32) -> (i32, i32) {
    %c0_i32 = arith.constant 0 : i32
    %c0_i32_0 = arith.constant 0 : i32
    return %arg0, %c0_i32 : i32, i32
  }
  func.func @transform_3(%arg0: i32) -> (i32, i32) {
    %c0_i32 = arith.constant 0 : i32
    %c0_i32_0 = arith.constant 0 : i32
    %c0_i32_1 = arith.constant 0 : i32
    return %c0_i32, %c0_i32_0 : i32, i32
  }
  func.func @transform_4(%arg0: i32) -> (i32, i32, i32) {
    %c0_i32 = arith.constant 0 : i32
    %c0_i32_0 = arith.constant 0 : i32
    %c0_i32_1 = arith.constant 0 : i32
    return %arg0, %c0_i32, %c0_i32_0 : i32, i32, i32
  }
}

</mosaic_0001>

<llo_original>
// kernel: center_loss.1
$region0: #{center_loss.1}
  #allocation0 [shape = 'u32[]', space=smem, size = 0x4, offset = 0x4, fixed_abs, tag = 'smem constant byte address 0x4 - core index']
  #allocation1 [shape = 'u32[144,128]{1,0:T(1,128)}', space=vmem, size = 0x12000, scoped, tag = 'internal scratch']
  %s0 = inlined_call_operand.vmem [shape: f32[8,32], index: 0, kind: input, shape index: {}]
  %s1 = inlined_call_operand.vmem [shape: s32[8,1], index: 1, kind: input, shape index: {}]
  %s2 = inlined_call_operand.vmem [shape: f32[8,1], index: 2, kind: input, shape index: {}]
  %s3 = inlined_call_operand.vmem [shape: f32[10,32], index: 3, kind: input, shape index: {}]
  %s4 = inlined_call_operand.hbm [shape: f32[1,1,128], index: 4, kind: output, shape index: {}]
  %s5 = sld [smem:[#allocation0]]
  $region26: #{center_loss.1} parent=0
    _
  %s7 = ssub.s32 1, %s5
  %s8 = scalar_select 0, %s7, %s5
  $region1: #{center_loss.1} parent=0
    #allocation2 [shape = 'u8[512]{0}', space=vmem, size = 0x400, scoped, tag = 'output window, operand 0, single buffered']
    #allocation3 [shape = 's32[1]{0}', space=sflag, size = 0x4, scoped, tag = 'scoped memory for center_loss.1']
    %9 = vsyncpa [#allocation3], 0
    // Predicated region
    $region2: #{center_loss.1} parent=1 // pred_check
      _
    $region3: #{center_loss.1} parent=1 // pred_check_branch
      %11 = sbr.rel (0) target = $region5
    $region4: #{center_loss.1} parent=1 // pred_region
      _
    $region5: #{center_loss.1} parent=1 // pred_fallthru
      _
    // Predicated region
    $region6: #{center_loss.1} parent=1 // pred_check
      _
    $region7: #{center_loss.1} parent=1 // pred_check_branch
      %13 = sbr.rel (0) target = $region9
    $region8: #{center_loss.1} parent=1 // pred_region
      _
    $region9: #{center_loss.1} parent=1 // pred_fallthru
      _
    // Predicated region
    $region10: #{center_loss.1} parent=1 // pred_check
      _
    $region11: #{center_loss.1} parent=1 // pred_check_branch
      %15 = sbr.rel (0) target = $region13
    $region12: #{center_loss.1} parent=1 // pred_region
      _
    $region13: #{center_loss.1} parent=1 // pred_fallthru
      _
    // Predicated region
    $region14: #{center_loss.1} parent=1 // pred_check
      _
    $region15: #{center_loss.1} parent=1 // pred_check_branch
      %17 = sbr.rel (0) target = $region17
    $region16: #{center_loss.1} parent=1 // pred_region
      _
    $region17: #{center_loss.1} parent=1 // pred_fallthru
      _
    %v18 = vld [vmem:[%s0] sm:$0xff]
    %v19 = vld [vmem:[%s1] sm:$0xff]
    %v20 = vlaneseq
    %v21 = vand.u32 %v20, 127
    %22 = vset.pattern.permute.xlu0 0
    %23 = vperm.xlu0 %22, %v19
    %v24 = vpop.permute.xlu0 %23
    %vm25 = vcmp.eq.s32.totalorder %v24, %v21
    %v26 = vsel %vm25, 1, 0
    %v27 = vcvt.s32.f32 %v26
    %v28 = vld [vmem:[%s3] sm:$0xff]
    %v29 = vld [vmem:[%s3 + $0x8] sm:$0x3]
    %vm30 = vcmask 80896
    %v32 = vsel %vm30, %v27, 0
    %vm34 = vcmask 1041408
    %v36 = vsel %vm34, %v29, 0
    %38 = vmatprep.subr.mxu0 0.0
    %39 = vmatpush1.msra.mxu0 0.0
    %40 = vmatprep.subr.mxu0 0.0
    %41 = vmatpush1.msra.mxu0 0.0
    %42 = vmatprep.subr.mxu0 0.0
    %43 = vmatpush1.msra.mxu0 0.0
    %44 = vmatprep.subr.mxu0 0.0
    %45 = vmatpush1.msra.mxu0 0.0
    %46 = vmatprep.subr.mxu0 0.0
    %47 = vmatpush1.msra.mxu0 0.0
    %48 = vmatprep.subr.mxu0 0.0
    %49 = vmatpush1.msra.mxu0 0.0
    %50 = vmatprep.subr.mxu0 0.0
    %51 = vmatpush1.msra.mxu0 0.0
    %52 = vmatprep.subr.mxu0 0.0
    %53 = vmatpush1.msra.mxu0 0.0
    %54 = vmatprep.subr.mxu0 0.0
    %55 = vmatpush1.msra.mxu0 0.0
    %56 = vmatprep.subr.mxu0 0.0
    %57 = vmatpush1.msra.mxu0 0.0
    %58 = vmatprep.subr.mxu0 0.0
    %59 = vmatpush1.msra.mxu0 0.0
    %60 = vmatprep.subr.mxu0 0.0
    %61 = vmatpush1.msra.mxu0 0.0
    %62 = vmatprep.subr.mxu0 0.0
    %63 = vmatpush1.msra.mxu0 0.0
    %64 = vmatprep.subr.mxu0 0.0
    %65 = vmatpush1.msra.mxu0 0.0
    %66 = vmatprep.subr.mxu0 0.0
    %67 = vmatpush1.msra.mxu0 %v36
    %68 = vmatprep.subr.mxu0 0.0
    %69 = vmatpush1.msra.mxu0 %v28
    %70 = vmatprep.subr.mxu0 0.0
    %71 = vmatpush2.msra.mxu0 0.0
    %72 = vmatprep.subr.mxu0 0.0
    %73 = vmatpush2.msra.mxu0 0.0
    %74 = vmatprep.subr.mxu0 0.0
    %75 = vmatpush2.msra.mxu0 0.0
    %76 = vmatprep.subr.mxu0 0.0
    %77 = vmatpush2.msra.mxu0 0.0
    %78 = vmatprep.subr.mxu0 0.0
    %79 = vmatpush2.msra.mxu0 0.0
    %80 = vmatprep.subr.mxu0 0.0
    %81 = vmatpush2.msra.mxu0 0.0
    %82 = vmatprep.subr.mxu0 0.0
    %83 = vmatpush2.msra.mxu0 0.0
    %84 = vmatprep.subr.mxu0 0.0
    %85 = vmatpush2.msra.mxu0 0.0
    %86 = vmatprep.subr.mxu0 0.0
    %87 = vmatpush2.msra.mxu0 0.0
    %88 = vmatprep.subr.mxu0 0.0
    %89 = vmatpush2.msra.mxu0 0.0
    %90 = vmatprep.subr.mxu0 0.0
    %91 = vmatpush2.msra.mxu0 0.0
    %92 = vmatprep.subr.mxu0 0.0
    %93 = vmatpush2.msra.mxu0 0.0
    %94 = vmatprep.subr.mxu0 0.0
    %95 = vmatpush2.msra.mxu0 0.0
    %96 = vmatprep.subr.mxu0 0.0
    %97 = vmatpush2.msra.mxu0 0.0
    %98 = vmatprep.subr.mxu0 0.0
    %99 = vmatpush2.msra.mxu0 0.0
    %100 = vmatprep.subr.mxu0 0.0
    %101 = vmatpush2.msra.mxu0 0.0
    %102 = vmatprep.mubr.f32.mxu0 0.0
    %103 = vmatmul.mubr.f32.gmra.mxu0 %v32
    %v104 = vpop.f32.mrf.mxu0
    %v105 = vadd.f32 0.0, %v104
    %v106 = vpop.f32.mrf.mxu0
    %107 = vdwg.mxu0
    %v108 = vsub.f32 %v18, %v105
    %v109 = vld [vmem:[%s2] sm:$0xff]
    %v110 = vmul.f32 %v108, %v108
    %vm111 = vcmask 261120
    %v112 = vsel %vm111, %v110, 0.0
    %113 = vadd.xlane.f32.xlu0 %v112
    %v114 = vpop.xlane.xlu0 %113
    %v115 = vmul.f32 %v114, %v109
    %vm116 = vcmask 7168
    %v117 = vsel %vm116, %v115, 0.0
    %118 = vadd.xlane.f32.xlu0 %v117
    %v119 = vpop.xlane.xlu0 %118
    %v120 = vrot.slane %v119, 4
    %v121 = vadd.f32 %v119, %v120
    %v122 = vrot.slane %v121, 2
    %v123 = vadd.f32 %v121, %v122
    %v124 = vrot.slane %v123, 1
    %v125 = vadd.f32 %v123, %v124
    %s126 = vtos %v125
    %v127 = vstv %s126
    %128 = vst [vmem:[#allocation2] sm:$0x1] %v127
    // Predicated region
    $region18: #{center_loss.1} parent=1 // pred_check
      _
    $region19: #{center_loss.1} parent=1 // pred_check_branch
      %130 = sbr.rel (0) target = $region21
    $region20: #{center_loss.1} parent=1 // pred_region
      %s132 = ssub.s32 16, 16
      %133 = vsyncadd [#allocation3], %s132
      %s135 = sshll.u32 [#allocation2], 4
      %s136 = int_to_ptr.vmem [resolvable:$true] %s135
      %138 = dma.vmem_to_hbm [thread:$0]  %s136, 16, %s4, [#allocation3]
    $region21: #{center_loss.1} parent=1 // pred_fallthru
      _
    // Predicated region
    $region22: #{center_loss.1} parent=1 // pred_check
      _
    $region23: #{center_loss.1} parent=1 // pred_check_branch
      %140 = sbr.rel (0) target = $region25
    $region24: #{center_loss.1} parent=1 // pred_region
      %141 = dma.done [#allocation3], 16
    $region25: #{center_loss.1} parent=1 // pred_fallthru
      _
    %142 = vsyncpa [#allocation3], 1

// kernel: center_loss.1
$region0: #{center_loss.1}
  #allocation0 [shape = 'u32[]', space=smem, size = 0x4, offset = 0x4, fixed_abs, tag = 'smem constant byte address 0x4 - core index']
  #allocation1 [shape = 'u32[144,128]{1,0:T(1,128)}', space=vmem, size = 0x12000, scoped, tag = 'internal scratch']
  %s0 = inlined_call_operand.vmem [shape: f32[8,32], index: 0, kind: input, shape index: {}]
  %s1 = inlined_call_operand.vmem [shape: s32[8,1], index: 1, kind: input, shape index: {}]
  %s2 = inlined_call_operand.vmem [shape: f32[8,1], index: 2, kind: input, shape index: {}]
  %s3 = inlined_call_operand.vmem [shape: f32[10,32], index: 3, kind: input, shape index: {}]
  %s4 = inlined_call_operand.hbm [shape: f32[1,1,128], index: 4, kind: output, shape index: {}]
  %s5 = sld [smem:[#allocation0]]
  $region26: #{center_loss.1} parent=0
    _
  %s7 = ssub.s32 1, %s5
  %s8 = scalar_select 0, %s7, %s5
  $region1: #{center_loss.1} parent=0
    #allocation2 [shape = 'u8[512]{0}', space=vmem, size = 0x400, scoped, tag = 'output window, operand 0, single buffered']
    #allocation3 [shape = 's32[1]{0}', space=sflag, size = 0x4, scoped, tag = 'scoped memory for center_loss.1']
    %9 = vsyncpa [#allocation3], 0
    // Predicated region
    $region2: #{center_loss.1} parent=1 // pred_check
      _
    $region3: #{center_loss.1} parent=1 // pred_check_branch
      %11 = sbr.rel (0) target = $region5
    $region4: #{center_loss.1} parent=1 // pred_region
      _
    $region5: #{center_loss.1} parent=1 // pred_fallthru
      _
    // Predicated region
    $region6: #{center_loss.1} parent=1 // pred_check
      _
    $region7: #{center_loss.1} parent=1 // pred_check_branch
      %13 = sbr.rel (0) target = $region9
    $region8: #{center_loss.1} parent=1 // pred_region
      _
    $region9: #{center_loss.1} parent=1 // pred_fallthru
      _
    // Predicated region
    $region10: #{center_loss.1} parent=1 // pred_check
      _
    $region11: #{center_loss.1} parent=1 // pred_check_branch
      %15 = sbr.rel (0) target = $region13
    $region12: #{center_loss.1} parent=1 // pred_region
      _
    $region13: #{center_loss.1} parent=1 // pred_fallthru
      _
    // Predicated region
    $region14: #{center_loss.1} parent=1 // pred_check
      _
    $region15: #{center_loss.1} parent=1 // pred_check_branch
      %17 = sbr.rel (0) target = $region17
    $region16: #{center_loss.1} parent=1 // pred_region
      _
    $region17: #{center_loss.1} parent=1 // pred_fallthru
      _
    %v18 = vld [vmem:[%s0] sm:$0xff]
    %v19 = vld [vmem:[%s1] sm:$0xff]
    %v20 = vlaneseq
    %v21 = vand.u32 %v20, 127
    %22 = vset.pattern.permute.xlu0 0
    %23 = vperm.xlu0 %22, %v19
    %v24 = vpop.permute.xlu0 %23
    %vm25 = vcmp.eq.s32.totalorder %v24, %v21
    %v26 = vsel %vm25, 1, 0
    %v27 = vcvt.s32.f32 %v26
    %v28 = vld [vmem:[%s3] sm:$0xff]
    %v29 = vld [vmem:[%s3 + $0x8] sm:$0x3]
    %vm30 = vcmask 80896
    %v32 = vsel %vm30, %v27, 0
    %vm34 = vcmask 1041408
    %v36 = vsel %vm34, %v29, 0
    %38 = vmatprep.subr.mxu0 0.0
    %39 = vmatpush1.msra.mxu0 0.0
    %40 = vmatprep.subr.mxu0 0.0
    %41 = vmatpush1.msra.mxu0 0.0
    %42 = vmatprep.subr.mxu0 0.0
    %43 = vmatpush1.msra.mxu0 0.0
    %44 = vmatprep.subr.mxu0 0.0
    %45 = vmatpush1.msra.mxu0 0.0
    %46 = vmatprep.subr.mxu0 0.0
    %47 = vmatpush1.msra.mxu0 0.0
    %48 = vmatprep.subr.mxu0 0.0
    %49 = vmatpush1.msra.mxu0 0.0
    %50 = vmatprep.subr.mxu0 0.0
    %51 = vmatpush1.msra.mxu0 0.0
    %52 = vmatprep.subr.mxu0 0.0
    %53 = vmatpush1.msra.mxu0 0.0
    %54 = vmatprep.subr.mxu0 0.0
    %55 = vmatpush1.msra.mxu0 0.0
    %56 = vmatprep.subr.mxu0 0.0
    %57 = vmatpush1.msra.mxu0 0.0
    %58 = vmatprep.subr.mxu0 0.0
    %59 = vmatpush1.msra.mxu0 0.0
    %60 = vmatprep.subr.mxu0 0.0
    %61 = vmatpush1.msra.mxu0 0.0
    %62 = vmatprep.subr.mxu0 0.0
    %63 = vmatpush1.msra.mxu0 0.0
    %64 = vmatprep.subr.mxu0 0.0
    %65 = vmatpush1.msra.mxu0 0.0
    %66 = vmatprep.subr.mxu0 0.0
    %67 = vmatpush1.msra.mxu0 %v36
    %68 = vmatprep.subr.mxu0 0.0
    %69 = vmatpush1.msra.mxu0 %v28
    %70 = vmatprep.subr.mxu0 0.0
    %71 = vmatpush2.msra.mxu0 0.0
    %72 = vmatprep.subr.mxu0 0.0
    %73 = vmatpush2.msra.mxu0 0.0
    %74 = vmatprep.subr.mxu0 0.0
    %75 = vmatpush2.msra.mxu0 0.0
    %76 = vmatprep.subr.mxu0 0.0
    %77 = vmatpush2.msra.mxu0 0.0
    %78 = vmatprep.subr.mxu0 0.0
    %79 = vmatpush2.msra.mxu0 0.0
    %80 = vmatprep.subr.mxu0 0.0
    %81 = vmatpush2.msra.mxu0 0.0
    %82 = vmatprep.subr.mxu0 0.0
    %83 = vmatpush2.msra.mxu0 0.0
    %84 = vmatprep.subr.mxu0 0.0
    %85 = vmatpush2.msra.mxu0 0.0
    %86 = vmatprep.subr.mxu0 0.0
    %87 = vmatpush2.msra.mxu0 0.0
    %88 = vmatprep.subr.mxu0 0.0
    %89 = vmatpush2.msra.mxu0 0.0
    %90 = vmatprep.subr.mxu0 0.0
    %91 = vmatpush2.msra.mxu0 0.0
    %92 = vmatprep.subr.mxu0 0.0
    %93 = vmatpush2.msra.mxu0 0.0
    %94 = vmatprep.subr.mxu0 0.0
    %95 = vmatpush2.msra.mxu0 0.0
    %96 = vmatprep.subr.mxu0 0.0
    %97 = vmatpush2.msra.mxu0 0.0
    %98 = vmatprep.subr.mxu0 0.0
    %99 = vmatpush2.msra.mxu0 0.0
    %100 = vmatprep.subr.mxu0 0.0
    %101 = vmatpush2.msra.mxu0 0.0
    %102 = vmatprep.mubr.f32.mxu0 0.0
    %103 = vmatmul.mubr.f32.gmra.mxu0 %v32
    %v104 = vpop.f32.mrf.mxu0
    %v105 = vadd.f32 0.0, %v104
    %v106 = vpop.f32.mrf.mxu0
    %107 = vdwg.mxu0
    %v108 = vsub.f32 %v18, %v105
    %v109 = vld [vmem:[%s2] sm:$0xff]
    %v110 = vmul.f32 %v108, %v108
    %vm111 = vcmask 261120
    %v112 = vsel %vm111, %v110, 0.0
    %113 = vadd.xlane.f32.xlu0 %v112
    %v114 = vpop.xlane.xlu0 %113
    %v115 = vmul.f32 %v114, %v109
    %vm116 = vcmask 7168
    %v117 = vsel %vm116, %v115, 0.0
    %118 = vadd.xlane.f32.xlu0 %v117
    %v119 = vpop.xlane.xlu0 %118
    %v120 = vrot.slane %v119, 4
    %v121 = vadd.f32 %v119, %v120
    %v122 = vrot.slane %v121, 2
    %v123 = vadd.f32 %v121, %v122
    %v124 = vrot.slane %v123, 1
    %v125 = vadd.f32 %v123, %v124
    %s126 = vtos %v125
    %v127 = vstv %s126
    %128 = vst [vmem:[#allocation2] sm:$0x1] %v127
    // Predicated region
    $region18: #{center_loss.1} parent=1 // pred_check
      _
    $region19: #{center_loss.1} parent=1 // pred_check_branch
      %130 = sbr.rel (0) target = $region21
    $region20: #{center_loss.1} parent=1 // pred_region
      %s132 = ssub.s32 16, 16
      %133 = vsyncadd [#allocation3], %s132
      %s135 = sshll.u32 [#allocation2], 4
      %s136 = int_to_ptr.vmem [resolvable:$true] %s135
      %138 = dma.vmem_to_hbm [thread:$0]  %s136, 16, %s4, [#allocation3]
    $region21: #{center_loss.1} parent=1 // pred_fallthru
      _
    // Predicated region
    $region22: #{center_loss.1} parent=1 // pred_check
      _
    $region23: #{center_loss.1} parent=1 // pred_check_branch
      %140 = sbr.rel (0) target = $region25
    $region24: #{center_loss.1} parent=1 // pred_region
      %141 = dma.done [#allocation3], 16
    $region25: #{center_loss.1} parent=1 // pred_fallthru
      _
    %142 = vsyncpa [#allocation3], 1

</llo_original>
